<compile_context>
chip_gen: v5e
topology: v5e:2x2
jax: 0.10.0
libtpu: 0.0.40
codegen_flags: <defaults>
</compile_context>

<pallas_src>
import math
from functools import partial

import jax
import jax.numpy as jnp
from jax import lax
from jax.experimental import pallas as pl
from jax.experimental.pallas import tpu as pltpu

_NEG_BIG = -1e30  # softmax mask / running-max init (avoids inf-inf NaNs)


def _round_up(x, m):
    return (x + m - 1) // m * m


def _batch_tiling(batch):
    """Return (tb, padded_batch).

    Prefer a sublane-aligned tile that divides `batch` exactly (no activation padding) and
    leaves >= 2 grid steps when batch allows (megacore); otherwise fall back to tb=8 with at
    most 7 padded batch rows (never a full 2x pad of the activations).
    """
    cap = batch // 2 if batch >= 16 else batch
    cap = max(8, min(128, (cap // 8) * 8))
    for t in range(cap, 7, -8):
        if batch % t == 0:
            return t, batch
    return 8, _round_up(batch, 8)


def _seq_tile(seq, tb, hid):
    """Sequence tile: whole L if the f32 intermediates stay small, else a multiple of 8."""
    budget_elems = 2 * 1024 * 1024          # ~8 MiB per (tb*tl, hid) f32 temporary
    tl = budget_elems // max(1, tb * hid)
    if tl >= seq:
        return seq
    return max(8, (tl // 8) * 8)


def _vmem_limit_bytes():
    """Generation-aware scoped-VMEM limit (3/4 of physical), with a safe fallback."""
    try:
        info = pltpu.get_tpu_info()
        cap = getattr(info, "vmem_capacity_bytes", None)
        if isinstance(cap, int) and cap > 0:
            return int(cap * 3 // 4)        # ~96 MiB on v5e/v6e, ~48 MiB on v7x
    except Exception:
        pass
    return 64 * 1024 * 1024


# ----------------------------------------------------------------------------
# Additive (Bahdanau) attention: fused projections + tanh + online softmax over
# the L grid axis + weighted sum.  Blocks are 3-D (tb, tl, H); all segment math
# is broadcasting / axis reductions (no selector matmuls).
# ----------------------------------------------------------------------------
def _additive_kernel(h_ref, q_ref, wh_ref, wq_ref, v_ref, o_ref,
                     pq_sc, m_sc, l_sc, acc_sc, *, tb, tl, seq):
    f32 = jnp.float32
    li = pl.program_id(1)
    needs_mask = (-(-seq // tl)) * tl != seq   # static (partial last L tile?)

    @pl.when(li == 0)
    def _():
        # cache q @ W_q across L steps; init online-softmax accumulators
        pq_sc[...] = jnp.dot(q_ref[...], wq_ref[...], preferred_element_type=f32)
        m_sc[...] = jnp.full(m_sc.shape, _NEG_BIG, f32)
        l_sc[...] = jnp.zeros(l_sc.shape, f32)
        acc_sc[...] = jnp.zeros(acc_sc.shape, f32)

    h3 = h_ref[...]                                                  # (tb, tl, H) bf16
    hid = h3.shape[-1]
    ph = jnp.dot(h3.reshape(tb * tl, hid), wh_ref[...],
                 preferred_element_type=f32).reshape(tb, tl, -1)     # (tb, tl, A)
    proj = jnp.tanh(ph + pq_sc[...][:, None, :])                     # (tb, tl, A)
    # score = v^T tanh(...): VPU multiply + lane reduce; scores laid out (tb, L-on-lanes)
    scores = jnp.sum(proj * v_ref[...].astype(f32), axis=-1)         # (tb, tl)

    if needs_mask:
        pos = li * tl + lax.broadcasted_iota(jnp.int32, (tb, tl), 1)
        scores = jnp.where(pos < seq, scores, _NEG_BIG)

    # Online softmax with exact per-batch running max.
    m_prev = m_sc[...]                                               # (tb, 1)
    m_cur = jnp.max(scores, axis=-1, keepdims=True)                  # (tb, 1)
    m_new = jnp.maximum(m_prev, m_cur)
    corr = jnp.exp(m_prev - m_new)                                   # (tb, 1)
    p = jnp.exp(scores - m_new)                                      # (tb, tl)

    contrib = p[:, :, None] * h3                                     # (tb, tl, H) f32
    if needs_mask:
        contrib = jnp.where((pos < seq)[:, :, None], contrib, 0.0)

    l_sc[...] = corr * l_sc[...] + jnp.sum(p, axis=-1, keepdims=True)
    acc_sc[...] = corr * acc_sc[...] + jnp.sum(contrib, axis=1)      # (tb, H)
    m_sc[...] = m_new

    @pl.when(li == pl.num_programs(1) - 1)
    def _():
        inv = pl.reciprocal(l_sc[...], approx=True)                  # denom >= 1 -> safe
        o_ref[...] = (acc_sc[...] * inv).astype(o_ref.dtype)


def additive_attention_forward(h, q, w_h, w_q, v_vec):
    B, L, H = h.shape
    A = w_h.shape[1]
    tb, Bp = _batch_tiling(B)
    tl = _seq_tile(L, tb, max(H, A))
    pad = Bp - B

    cdt = jnp.bfloat16                      # bf16 HBM storage, f32 accumulation in-kernel
    h_c, q_c = h.astype(cdt), q.astype(cdt)
    if pad:                                 # at most 7 rows (see _batch_tiling)
        h_c = jnp.pad(h_c, ((0, pad), (0, 0), (0, 0)))
        q_c = jnp.pad(q_c, ((0, pad), (0, 0)))
    v_row = jnp.reshape(v_vec, (1, A)).astype(cdt)

    out = pl.pallas_call(
        partial(_additive_kernel, tb=tb, tl=tl, seq=L),
        out_shape=jax.ShapeDtypeStruct((Bp, H), jnp.float32),
        grid_spec=pltpu.PrefetchScalarGridSpec(
            num_scalar_prefetch=0,
            grid=(Bp // tb, pl.cdiv(L, tl)),          # reduction (L) axis last
            in_specs=[
                pl.BlockSpec((tb, tl, H), lambda b, l: (b, l, 0)),   # h
                pl.BlockSpec((tb, H), lambda b, l: (b, 0)),          # q
                pl.BlockSpec((H, A), lambda b, l: (0, 0)),           # W_h
                pl.BlockSpec((H, A), lambda b, l: (0, 0)),           # W_q
                pl.BlockSpec((1, A), lambda b, l: (0, 0)),           # v
            ],
            out_specs=pl.BlockSpec((tb, H), lambda b, l: (b, 0)),
            scratch_shapes=[
                pltpu.VMEM((tb, A), jnp.float32),     # cached q @ W_q
                pltpu.VMEM((tb, 1), jnp.float32),     # running max
                pltpu.VMEM((tb, 1), jnp.float32),     # running denominator
                pltpu.VMEM((tb, H), jnp.float32),     # running numerator
            ],
        ),
        compiler_params=pltpu.CompilerParams(
            dimension_semantics=("parallel", "arbitrary"),
            vmem_limit_bytes=_vmem_limit_bytes(),
        ),
    )(h_c, q_c, w_h.astype(cdt), w_q.astype(cdt), v_row)
    return out[:B]


# ----------------------------------------------------------------------------
# Multi-head dot-product attention (query length 1 per batch element).
# Head bookkeeping is a lane-group reshape (tb, tl, NH, dk); softmax is online
# over the L grid axis with an exact per-(batch, head) running max.
# ----------------------------------------------------------------------------
def _mha_kernel(q_ref, k_ref, v_ref, wq_ref, wk_ref, wv_ref, wo_ref, b_ref, o_ref,
                qp_sc, m_sc, l_sc, acc_sc, *, tb, tl, seq, hid, num_heads):
    f32 = jnp.float32
    dk = hid // num_heads
    scale = 1.0 / math.sqrt(dk)
    li = pl.program_id(1)
    needs_mask = (-(-seq // tl)) * tl != seq   # static (partial last L tile?)

    bias = b_ref[...]                                                # (8, H) f32 (packed)
    bq, bk, bv, bo = bias[0:1], bias[1:2], bias[2:3], bias[3:4]

    @pl.when(li == 0)
    def _():
        # cache scaled q projection across L steps; init online-softmax accumulators
        qp_sc[...] = (jnp.dot(q_ref[...], wq_ref[...],
                              preferred_element_type=f32) + bq) * scale
        m_sc[...] = jnp.full(m_sc.shape, _NEG_BIG, f32)
        l_sc[...] = jnp.zeros(l_sc.shape, f32)
        acc_sc[...] = jnp.zeros(acc_sc.shape, f32)

    # Fused K/V projections: one big (tb*tl, H) x (H, H) bf16 MXU matmul each.
    k2d = k_ref[...].reshape(tb * tl, hid)
    v2d = v_ref[...].reshape(tb * tl, hid)
    kp = jnp.dot(k2d, wk_ref[...], preferred_element_type=f32) + bk  # (tb*tl, H)
    vp = jnp.dot(v2d, wv_ref[...], preferred_element_type=f32) + bv  # (tb*tl, H)

    # Lane-group head split (no selector matmuls, no replicated-q temporary).
    kp4 = kp.reshape(tb, tl, num_heads, dk)
    vp4 = vp.reshape(tb, tl, num_heads, dk)
    qp4 = qp_sc[...].reshape(tb, 1, num_heads, dk)                   # broadcast over L

    s = jnp.sum(kp4 * qp4, axis=-1)                                  # (tb, tl, NH)
    if needs_mask:
        pos = li * tl + lax.broadcasted_iota(jnp.int32, (tb, tl, num_heads), 1)
        s = jnp.where(pos < seq, s, _NEG_BIG)

    # Online softmax with exact per-(batch, head) running max.
    m_prev = m_sc[...]                                               # (tb, NH)
    m_cur = jnp.max(s, axis=1)                                       # (tb, NH)
    m_new = jnp.maximum(m_prev, m_cur)
    corr = jnp.exp(m_prev - m_new)                                   # (tb, NH)
    p = jnp.exp(s - m_new[:, None, :])                               # (tb, tl, NH)

    contrib = p[:, :, :, None] * vp4                                 # (tb, tl, NH, dk)
    if needs_mask:
        contrib = jnp.where((pos < seq)[:, :, :, None], contrib, 0.0)

    l_sc[...] = corr * l_sc[...] + jnp.sum(p, axis=1)                # (tb, NH)
    acc_sc[...] = corr[:, :, None] * acc_sc[...] + jnp.sum(contrib, axis=1)  # (tb, NH, dk)
    m_sc[...] = m_new

    @pl.when(li == pl.num_programs(1) - 1)
    def _():
        inv = pl.reciprocal(l_sc[...], approx=True)                  # denom >= 1 -> safe
        ctx = (acc_sc[...] * inv[:, :, None]).reshape(tb, hid)       # concat heads
        out = jnp.dot(ctx.astype(jnp.bfloat16), wo_ref[...],
                      preferred_element_type=f32) + bo
        o_ref[...] = out.astype(o_ref.dtype)


def multihead_attention_forward(q, k, v, wq, wk, wv, wo, bq, bk, bv, bo, num_heads):
    B, L, H = k.shape
    assert H % num_heads == 0, "hidden size must be divisible by num_heads"
    tb, Bp = _batch_tiling(B)
    tl = _seq_tile(L, tb, H)
    pad = Bp - B
    dk = H // num_heads

    cdt = jnp.bfloat16
    q_c, k_c, v_c = q.astype(cdt), k.astype(cdt), v.astype(cdt)
    if pad:                                 # at most 7 rows (see _batch_tiling)
        q_c = jnp.pad(q_c, ((0, pad), (0, 0)))
        k_c = jnp.pad(k_c, ((0, pad), (0, 0), (0, 0)))
        v_c = jnp.pad(v_c, ((0, pad), (0, 0), (0, 0)))
    # pack the 4 biases into one sublane-aligned (8, H) f32 block
    bias_rows = jnp.concatenate([jnp.reshape(x, (1, H)) for x in (bq, bk, bv, bo)], axis=0)
    biases = jnp.pad(bias_rows.astype(jnp.float32), ((0, 4), (0, 0)))

    out = pl.pallas_call(
        partial(_mha_kernel, tb=tb, tl=tl, seq=L, hid=H, num_heads=num_heads),
        out_shape=jax.ShapeDtypeStruct((Bp, H), jnp.float32),
        grid_spec=pltpu.PrefetchScalarGridSpec(
            num_scalar_prefetch=0,
            grid=(Bp // tb, pl.cdiv(L, tl)),          # reduction (L) axis last
            in_specs=[
                pl.BlockSpec((tb, H), lambda b, l: (b, 0)),          # q
                pl.BlockSpec((tb, tl, H), lambda b, l: (b, l, 0)),   # k
                pl.BlockSpec((tb, tl, H), lambda b, l: (b, l, 0)),   # v
                pl.BlockSpec((H, H), lambda b, l: (0, 0)),           # Wq
                pl.BlockSpec((H, H), lambda b, l: (0, 0)),           # Wk
                pl.BlockSpec((H, H), lambda b, l: (0, 0)),           # Wv
                pl.BlockSpec((H, H), lambda b, l: (0, 0)),           # Wo
                pl.BlockSpec((8, H), lambda b, l: (0, 0)),           # packed biases
            ],
            out_specs=pl.BlockSpec((tb, H), lambda b, l: (b, 0)),
            scratch_shapes=[
                pltpu.VMEM((tb, H), jnp.float32),               # cached scaled q projection
                pltpu.VMEM((tb, num_heads), jnp.float32),       # running max
                pltpu.VMEM((tb, num_heads), jnp.float32),       # running denominator
                pltpu.VMEM((tb, num_heads, dk), jnp.float32),   # running numerator
            ],
        ),
        compiler_params=pltpu.CompilerParams(
            dimension_semantics=("parallel", "arbitrary"),
            vmem_limit_bytes=_vmem_limit_bytes(),
        ),
    )(q_c, k_c, v_c, wq.astype(cdt), wk.astype(cdt), wv.astype(cdt), wo.astype(cdt), biases)
    # Custom MultiHeadAttention returns (attention_weights, output); the wrapper discards
    # the weights, so we do not materialize them here.
    return None, out[:B]


# ----------------------------------------------------------------------------
# enriched_attention wrapper (mirrors the PyTorch module's forward dispatch)
# ----------------------------------------------------------------------------
class EnrichedAttention:
    def __init__(self, attention_function, **params):
        self.attention_function = attention_function
        self.params = params

    def __call__(self, **inputs):
        if self.attention_function == "additive":
            return additive_attention_forward(**inputs, **self.params)
        elif self.attention_function == "dot_product":
            _, o = multihead_attention_forward(**inputs, **self.params)
            return o


# ----------------------------------------------------------------------------
# Pure-JAX references for validation
# ----------------------------------------------------------------------------
def _additive_ref(h, q, w_h, w_q, v_vec):
    proj = jnp.tanh(h @ w_h + (q @ w_q)[:, None, :])           # [B, L, A]
    scores = jnp.squeeze(proj @ v_vec, -1)                     # [B, L]
    alpha = jax.nn.softmax(scores, axis=-1)                    # [B, L]
    return jnp.einsum("bl,blh->bh", alpha, h)


def _mha_ref(q, k, v, wq, wk, wv, wo, bq, bk, bv, bo, num_heads):
    B, L, H = k.shape
    dk = H // num_heads
    qp = (q @ wq + bq).reshape(B, num_heads, dk)
    kp = (k @ wk + bk).reshape(B, L, num_heads, dk)
    vp = (v @ wv + bv).reshape(B, L, num_heads, dk)
    s = jnp.einsum("bnd,blnd->bnl", qp, kp) / math.sqrt(dk)
    p = jax.nn.softmax(s, axis=-1)
    ctx = jnp.einsum("bnl,blnd->bnd", p, vp).reshape(B, H)
    return ctx @ wo + bo


if __name__ == "__main__":
    B, L, H, A, NH = 2, 8, 32, 32, 4
    key = jax.random.PRNGKey(0)
    ks = jax.random.split(key, 16)

    def q16(x):  # bf16-representable values so the bf16-storage kernel and f32 reference agree
        return x.astype(jnp.bfloat16).astype(jnp.float32)

    # inputs
    h = q16(jax.random.normal(ks[0], (B, L, H), jnp.float32))
    q = q16(jax.random.normal(ks[1], (B, H), jnp.float32))
    k_in = q16(jax.random.normal(ks[2], (B, L, H), jnp.float32))
    v_in = q16(jax.random.normal(ks[3], (B, L, H), jnp.float32))

    # additive_attention params
    w_h = q16(0.1 * jax.random.normal(ks[4], (H, A), jnp.float32))
    w_q = q16(0.1 * jax.random.normal(ks[5], (H, A), jnp.float32))
    v_vec = q16(0.1 * jax.random.normal(ks[6], (A, 1), jnp.float32))

    # MultiHeadAttention params
    wq = q16(0.1 * jax.random.normal(ks[7], (H, H), jnp.float32))
    wk = q16(0.1 * jax.random.normal(ks[8], (H, H), jnp.float32))
    wv = q16(0.1 * jax.random.normal(ks[9], (H, H), jnp.float32))
    wo = q16(0.1 * jax.random.normal(ks[10], (H, H), jnp.float32))
    bq = 0.01 * jax.random.normal(ks[11], (1, H), jnp.float32)
    bk = 0.01 * jax.random.normal(ks[12], (1, H), jnp.float32)
    bv = 0.01 * jax.random.normal(ks[13], (1, H), jnp.float32)
    bo = 0.01 * jax.random.normal(ks[14], (1, H), jnp.float32)

    # --- additive branch ---
    mod_add = EnrichedAttention("additive", w_h=w_h, w_q=w_q, v_vec=v_vec)
    out_add = jax.block_until_ready(mod_add(h=h, q=q))
    ref_add = _additive_ref(h, q, w_h, w_q, v_vec)
    assert out_add.shape == (B, H)
    assert jnp.allclose(out_add, ref_add, rtol=1e-2, atol=1e-2), "additive mismatch"

    # --- dot_product branch ---
    mod_dot = EnrichedAttention(
        "dot_product", wq=wq, wk=wk, wv=wv, wo=wo,
        bq=bq, bk=bk, bv=bv, bo=bo, num_heads=NH)
    out_dot = jax.block_until_ready(mod_dot(q=q, k=k_in, v=v_in))
    ref_dot = _mha_ref(q, k_in, v_in, wq, wk, wv, wo, bq, bk, bv, bo, NH)
    assert out_dot.shape == (B, H)
    assert jnp.allclose(out_dot, ref_dot, rtol=1e-2, atol=1e-2), "dot_product mismatch"

    print("KERNEL_OK")
</pallas_src>

<mosaic_0001>
module attributes {stable_mosaic.version = 11 : i64} {
  func.func @_additive_kernel(%arg0: i32, %arg1: i32, %arg2: memref<8x8x32xbf16, #tpu.memory_space<vmem>>, %arg3: memref<8x32xbf16, #tpu.memory_space<vmem>>, %arg4: memref<32x32xbf16, #tpu.memory_space<vmem>>, %arg5: memref<32x32xbf16, #tpu.memory_space<vmem>>, %arg6: memref<1x32xbf16, #tpu.memory_space<vmem>>, %arg7: memref<8x32xf32, #tpu.memory_space<vmem>>, %arg8: memref<8x32xf32, #tpu.memory_space<vmem>>, %arg9: memref<8x1xf32, #tpu.memory_space<vmem>>, %arg10: memref<8x1xf32, #tpu.memory_space<vmem>>, %arg11: memref<8x32xf32, #tpu.memory_space<vmem>>) attributes {dimension_semantics = [#tpu.dimension_semantics<parallel>, #tpu.dimension_semantics<arbitrary>], iteration_bounds = array<i64: 1, 1>, scalar_prefetch = 0 : i64, scratch_operands = 4 : i64, tpu.core_type = #tpu.core_type<tc>, window_params = [{transform_indices = @transform_0, window_bounds = array<i64: 8, 8, 32>}, {transform_indices = @transform_1, window_bounds = array<i64: 8, 32>}, {pipeline_mode = #tpu.pipeline_mode<synchronous>, transform_indices = @transform_2, window_bounds = array<i64: 32, 32>}, {pipeline_mode = #tpu.pipeline_mode<synchronous>, transform_indices = @transform_3, window_bounds = array<i64: 32, 32>}, {pipeline_mode = #tpu.pipeline_mode<synchronous>, transform_indices = @transform_4, window_bounds = array<i64: 1, 32>}, {transform_indices = @transform_5, window_bounds = array<i64: 8, 32>}]} {
    %c0_i32 = arith.constant 0 : i32
    %0 = arith.cmpi eq, %arg1, %c0_i32 : i32
    %1 = arith.extui %0 : i1 to i32
    %c0_i32_0 = arith.constant 0 : i32
    %2 = arith.cmpi ne, %1, %c0_i32_0 : i32
    scf.if %2 {
      %c0_27 = arith.constant 0 : index
      %c0_28 = arith.constant 0 : index
      %48 = vector.load %arg3[%c0_27, %c0_28] : memref<8x32xbf16, #tpu.memory_space<vmem>>, vector<8x32xbf16>
      %c0_29 = arith.constant 0 : index
      %c0_30 = arith.constant 0 : index
      %49 = vector.load %arg5[%c0_29, %c0_30] : memref<32x32xbf16, #tpu.memory_space<vmem>>, vector<32x32xbf16>
      %cst_31 = arith.constant dense<0.000000e+00> : vector<8x32xf32>
      %50 = tpu.matmul %48, %49, %cst_31 {dimension_numbers = #tpu.dot_dimension_numbers<[1], [0], [0], [1], [0, 0, 1, 1], [], []>} : vector<8x32xbf16>, vector<32x32xbf16>, vector<8x32xf32> -> vector<8x32xf32>
      %c0_32 = arith.constant 0 : index
      %c0_33 = arith.constant 0 : index
      %51 = vector.load %arg8[%c0_32, %c0_33] : memref<8x32xf32, #tpu.memory_space<vmem>>, vector<8x32xf32>
      tpu.vector_store %arg8[%c0_32, %c0_33], %50 {strides = array<i32>} : memref<8x32xf32, #tpu.memory_space<vmem>>, vector<8x32xf32>,
      %cst_34 = arith.constant -1.000000e+30 : f32
      %52 = vector.broadcast %cst_34 : f32 to vector<8x1xf32>
      %c0_35 = arith.constant 0 : index
      %c0_36 = arith.constant 0 : index
      %53 = vector.load %arg9[%c0_35, %c0_36] : memref<8x1xf32, #tpu.memory_space<vmem>>, vector<8x1xf32>
      tpu.vector_store %arg9[%c0_35, %c0_36], %52 {strides = array<i32>} : memref<8x1xf32, #tpu.memory_space<vmem>>, vector<8x1xf32>,
      %cst_37 = arith.constant 0.000000e+00 : f32
      %54 = vector.broadcast %cst_37 : f32 to vector<8x1xf32>
      %c0_38 = arith.constant 0 : index
      %c0_39 = arith.constant 0 : index
      %55 = vector.load %arg10[%c0_38, %c0_39] : memref<8x1xf32, #tpu.memory_space<vmem>>, vector<8x1xf32>
      tpu.vector_store %arg10[%c0_38, %c0_39], %54 {strides = array<i32>} : memref<8x1xf32, #tpu.memory_space<vmem>>, vector<8x1xf32>,
      %cst_40 = arith.constant 0.000000e+00 : f32
      %56 = vector.broadcast %cst_40 : f32 to vector<8x32xf32>
      %c0_41 = arith.constant 0 : index
      %c0_42 = arith.constant 0 : index
      %57 = vector.load %arg11[%c0_41, %c0_42] : memref<8x32xf32, #tpu.memory_space<vmem>>, vector<8x32xf32>
      tpu.vector_store %arg11[%c0_41, %c0_42], %56 {strides = array<i32>} : memref<8x32xf32, #tpu.memory_space<vmem>>, vector<8x32xf32>,
    } else {
    }
    %c0 = arith.constant 0 : index
    %c0_1 = arith.constant 0 : index
    %c0_2 = arith.constant 0 : index
    %3 = vector.load %arg2[%c0, %c0_1, %c0_2] : memref<8x8x32xbf16, #tpu.memory_space<vmem>>, vector<8x8x32xbf16>
    %4 = vector.shape_cast %3 : vector<8x8x32xbf16> to vector<64x32xbf16>
    %c0_3 = arith.constant 0 : index
    %c0_4 = arith.constant 0 : index
    %5 = vector.load %arg4[%c0_3, %c0_4] : memref<32x32xbf16, #tpu.memory_space<vmem>>, vector<32x32xbf16>
    %cst = arith.constant dense<0.000000e+00> : vector<64x32xf32>
    %6 = tpu.matmul %4, %5, %cst {dimension_numbers = #tpu.dot_dimension_numbers<[1], [0], [0], [1], [0, 0, 1, 1], [], []>} : vector<64x32xbf16>, vector<32x32xbf16>, vector<64x32xf32> -> vector<64x32xf32>
    %7 = vector.shape_cast %6 : vector<64x32xf32> to vector<8x8x32xf32>
    %c0_5 = arith.constant 0 : index
    %c0_6 = arith.constant 0 : index
    %8 = vector.load %arg8[%c0_5, %c0_6] : memref<8x32xf32, #tpu.memory_space<vmem>>, vector<8x32xf32>
    %9 = vector.shape_cast %8 : vector<8x32xf32> to vector<8x1x32xf32>
    %10 = vector.broadcast %9 : vector<8x1x32xf32> to vector<8x8x32xf32>
    %11 = arith.addf %7, %10 : vector<8x8x32xf32>
    %12 = math.tanh %11 : vector<8x8x32xf32>
    %c0_7 = arith.constant 0 : index
    %c0_8 = arith.constant 0 : index
    %13 = vector.load %arg6[%c0_7, %c0_8] : memref<1x32xbf16, #tpu.memory_space<vmem>>, vector<1x32xbf16>
    %14 = arith.extf %13 : vector<1x32xbf16> to vector<1x32xf32>
    %15 = vector.shape_cast %14 : vector<1x32xf32> to vector<1x1x32xf32>
    %16 = vector.broadcast %15 : vector<1x1x32xf32> to vector<8x8x32xf32>
    %17 = arith.mulf %12, %16 : vector<8x8x32xf32>
    %cst_9 = arith.constant dense<0.000000e+00> : vector<8x8xf32>
    %18 = vector.multi_reduction <add>, %17, %cst_9 [2] : vector<8x8x32xf32> to vector<8x8xf32>
    %c0_10 = arith.constant 0 : index
    %c0_11 = arith.constant 0 : index
    %19 = vector.load %arg9[%c0_10, %c0_11] : memref<8x1xf32, #tpu.memory_space<vmem>>, vector<8x1xf32>
    %cst_12 = arith.constant dense<0xFF800000> : vector<8xf32>
    %20 = vector.multi_reduction <maximumf>, %18, %cst_12 [1] : vector<8x8xf32> to vector<8xf32>
    %21 = vector.shape_cast %20 : vector<8xf32> to vector<8x1xf32>
    %22 = arith.maximumf %19, %21 : vector<8x1xf32>
    %23 = arith.subf %19, %22 : vector<8x1xf32>
    %24 = math.exp %23 : vector<8x1xf32>
    %25 = vector.broadcast %22 : vector<8x1xf32> to vector<8x8xf32>
    %26 = arith.subf %18, %25 : vector<8x8xf32>
    %27 = math.exp %26 : vector<8x8xf32>
    %28 = vector.shape_cast %27 : vector<8x8xf32> to vector<8x8x1xf32>
    %29 = arith.extf %3 : vector<8x8x32xbf16> to vector<8x8x32xf32>
    %30 = vector.broadcast %28 : vector<8x8x1xf32> to vector<8x8x32xf32>
    %31 = arith.mulf %30, %29 : vector<8x8x32xf32>
    %c0_13 = arith.constant 0 : index
    %c0_14 = arith.constant 0 : index
    %32 = vector.load %arg10[%c0_13, %c0_14] : memref<8x1xf32, #tpu.memory_space<vmem>>, vector<8x1xf32>
    %33 = arith.mulf %24, %32 : vector<8x1xf32>
    %cst_15 = arith.constant dense<0.000000e+00> : vector<8xf32>
    %34 = vector.multi_reduction <add>, %27, %cst_15 [1] : vector<8x8xf32> to vector<8xf32>
    %35 = vector.shape_cast %34 : vector<8xf32> to vector<8x1xf32>
    %36 = arith.addf %33, %35 : vector<8x1xf32>
    %c0_16 = arith.constant 0 : index
    %c0_17 = arith.constant 0 : index
    %37 = vector.load %arg10[%c0_16, %c0_17] : memref<8x1xf32, #tpu.memory_space<vmem>>, vector<8x1xf32>
    tpu.vector_store %arg10[%c0_16, %c0_17], %36 {strides = array<i32>} : memref<8x1xf32, #tpu.memory_space<vmem>>, vector<8x1xf32>,
    %c0_18 = arith.constant 0 : index
    %c0_19 = arith.constant 0 : index
    %38 = vector.load %arg11[%c0_18, %c0_19] : memref<8x32xf32, #tpu.memory_space<vmem>>, vector<8x32xf32>
    %39 = vector.broadcast %24 : vector<8x1xf32> to vector<8x32xf32>
    %40 = arith.mulf %39, %38 : vector<8x32xf32>
    %cst_20 = arith.constant dense<0.000000e+00> : vector<8x32xf32>
    %41 = vector.multi_reduction <add>, %31, %cst_20 [1] : vector<8x8x32xf32> to vector<8x32xf32>
    %42 = arith.addf %40, %41 : vector<8x32xf32>
    %c0_21 = arith.constant 0 : index
    %c0_22 = arith.constant 0 : index
    %43 = vector.load %arg11[%c0_21, %c0_22] : memref<8x32xf32, #tpu.memory_space<vmem>>, vector<8x32xf32>
    tpu.vector_store %arg11[%c0_21, %c0_22], %42 {strides = array<i32>} : memref<8x32xf32, #tpu.memory_space<vmem>>, vector<8x32xf32>,
    %c0_23 = arith.constant 0 : index
    %c0_24 = arith.constant 0 : index
    %44 = vector.load %arg9[%c0_23, %c0_24] : memref<8x1xf32, #tpu.memory_space<vmem>>, vector<8x1xf32>
    tpu.vector_store %arg9[%c0_23, %c0_24], %22 {strides = array<i32>} : memref<8x1xf32, #tpu.memory_space<vmem>>, vector<8x1xf32>,
    %c0_i32_25 = arith.constant 0 : i32
    %45 = arith.cmpi eq, %arg1, %c0_i32_25 : i32
    %46 = arith.extui %45 : i1 to i32
    %c0_i32_26 = arith.constant 0 : i32
    %47 = arith.cmpi ne, %46, %c0_i32_26 : i32
    scf.if %47 {
      %c0_27 = arith.constant 0 : index
      %c0_28 = arith.constant 0 : index
      %48 = vector.load %arg10[%c0_27, %c0_28] : memref<8x1xf32, #tpu.memory_space<vmem>>, vector<8x1xf32>
      %49 = tpu.reciprocal %48 {approx = true} : vector<8x1xf32> -> vector<8x1xf32>
      %c0_29 = arith.constant 0 : index
      %c0_30 = arith.constant 0 : index
      %50 = vector.load %arg11[%c0_29, %c0_30] : memref<8x32xf32, #tpu.memory_space<vmem>>, vector<8x32xf32>
      %51 = vector.broadcast %49 : vector<8x1xf32> to vector<8x32xf32>
      %52 = arith.mulf %50, %51 : vector<8x32xf32>
      %c0_31 = arith.constant 0 : index
      %c0_32 = arith.constant 0 : index
      %53 = vector.load %arg7[%c0_31, %c0_32] : memref<8x32xf32, #tpu.memory_space<vmem>>, vector<8x32xf32>
      tpu.vector_store %arg7[%c0_31, %c0_32], %52 {strides = array<i32>} : memref<8x32xf32, #tpu.memory_space<vmem>>, vector<8x32xf32>,
    } else {
    }
    return
  }
  func.func @transform_0(%arg0: i32, %arg1: i32) -> (i32, i32, i32) {
    %c0_i32 = arith.constant 0 : i32
    %c0_i32_0 = arith.constant 0 : i32
    return %arg0, %arg1, %c0_i32 : i32, i32, i32
  }
  func.func @transform_1(%arg0: i32, %arg1: i32) -> (i32, i32) {
    %c0_i32 = arith.constant 0 : i32
    %c0_i32_0 = arith.constant 0 : i32
    return %arg0, %c0_i32 : i32, i32
  }
  func.func @transform_2(%arg0: i32, %arg1: i32) -> (i32, i32) {
    %c0_i32 = arith.constant 0 : i32
    %c0_i32_0 = arith.constant 0 : i32
    %c0_i32_1 = arith.constant 0 : i32
    return %c0_i32, %c0_i32_0 : i32, i32
  }
  func.func @transform_3(%arg0: i32, %arg1: i32) -> (i32, i32) {
    %c0_i32 = arith.constant 0 : i32
    %c0_i32_0 = arith.constant 0 : i32
    %c0_i32_1 = arith.constant 0 : i32
    return %c0_i32, %c0_i32_0 : i32, i32
  }
  func.func @transform_4(%arg0: i32, %arg1: i32) -> (i32, i32) {
    %c0_i32 = arith.constant 0 : i32
    %c0_i32_0 = arith.constant 0 : i32
    %c0_i32_1 = arith.constant 0 : i32
    return %c0_i32, %c0_i32_0 : i32, i32
  }
  func.func @transform_5(%arg0: i32, %arg1: i32) -> (i32, i32) {
    %c0_i32 = arith.constant 0 : i32
    %c0_i32_0 = arith.constant 0 : i32
    return %arg0, %c0_i32 : i32, i32
  }
}

</mosaic_0001>

<llo_original>
// kernel: tpu_custom_call.1
$region0: #{tpu_custom_call.1}
  #allocation0 [shape = 'u32[]', space=smem, size = 0x4, offset = 0x4, fixed_abs, tag = 'smem constant byte address 0x4 - core index']
  #allocation1 [shape = 'u32[72,128]{1,0:T(1,128)}', space=vmem, size = 0x9000, scoped, tag = 'internal scratch']
  #allocation2 [shape = 'f32[8,32]{1,0:T(8,128)}', space=vmem, size = 0x1000, scoped, tag = 'scratch operand']
  #allocation3 [shape = 'f32[8,1]{1,0:T(8,128)}', space=vmem, size = 0x1000, scoped, tag = 'scratch operand']
  #allocation4 [shape = 'f32[8,1]{1,0:T(8,128)}', space=vmem, size = 0x1000, scoped, tag = 'scratch operand']
  #allocation5 [shape = 'f32[8,32]{1,0:T(8,128)}', space=vmem, size = 0x1000, scoped, tag = 'scratch operand']
  %s0 = inlined_call_operand.hbm [shape: bf16[8,8,32], index: 0, kind: input, shape index: {}]
  %s1 = inlined_call_operand.hbm [shape: bf16[8,32], index: 1, kind: input, shape index: {}]
  %s2 = inlined_call_operand.hbm [shape: bf16[32,32], index: 2, kind: input, shape index: {}]
  %s3 = inlined_call_operand.hbm [shape: bf16[32,32], index: 3, kind: input, shape index: {}]
  %s4 = inlined_call_operand.vmem [shape: bf16[1,32], index: 4, kind: input, shape index: {}]
  %s5 = inlined_call_operand.hbm [shape: f32[8,32], index: 5, kind: output, shape index: {}]
  %s6 = sld [smem:[#allocation0]]
  $region54: #{tpu_custom_call.1} parent=0
    _
  %s8 = ssub.s32 1, %s6
  %s9 = scalar_select 0, %s8, %s6
  $region1: #{tpu_custom_call.1} parent=0
    #allocation6 [shape = 'u8[16384]{0}', space=vmem, size = 0x4000, scoped, tag = 'input window, operand 0, single buffered']
    #allocation7 [shape = 's32[1]{0}', space=sflag, size = 0x4, scoped, tag = 'scoped memory for tpu_custom_call.1']
    #allocation8 [shape = 's32[1]{0}', space=sflag, size = 0x4, scoped, tag = 'scoped memory for tpu_custom_call.1']
    #allocation9 [shape = 'u8[2048]{0}', space=vmem, size = 0x800, scoped, tag = 'input window, operand 1, single buffered']
    #allocation10 [shape = 's32[1]{0}', space=sflag, size = 0x4, scoped, tag = 'scoped memory for tpu_custom_call.1']
    #allocation11 [shape = 'u8[8192]{0}', space=vmem, size = 0x2000, scoped, tag = 'input window, operand 2, single buffered']
    #allocation12 [shape = 'u8[8192]{0}', space=vmem, size = 0x2000, scoped, tag = 'input window, operand 3, single buffered']
    #allocation13 [shape = 's32[1]{0}', space=sflag, size = 0x4, scoped, tag = 'scoped memory for tpu_custom_call.1']
    #allocation14 [shape = 'u8[4096]{0}', space=vmem, size = 0x1000, scoped, tag = 'output window, operand 0, single buffered']
    %10 = vsyncpa [#allocation7], 0
    %11 = vsyncpa [#allocation10], 0
    %12 = vsyncpa [#allocation13], 0
    %13 = vsyncpa [#allocation8], 0
    // Predicated region
    $region2: #{tpu_custom_call.1} parent=1 // pred_check
      _
    $region3: #{tpu_custom_call.1} parent=1 // pred_check_branch
      %15 = sbr.rel (0) target = $region5
    $region4: #{tpu_custom_call.1} parent=1 // pred_region
      %17 = vsyncadd [#allocation7], 0
      %s18 = sshll.u32 %s0, 4
      %s19 = int_to_ptr.hbm [resolvable:$true] %s18
      %s20 = sshll.u32 [#allocation6], 4
      %s21 = int_to_ptr.vmem [resolvable:$true] %s20
      %26 = dma.hbm_to_vmem [thread:$0]  %s19, 512, %s21, [#allocation7], 64, 64, 4
    $region5: #{tpu_custom_call.1} parent=1 // pred_fallthru
      _
    // Predicated region
    $region6: #{tpu_custom_call.1} parent=1 // pred_check
      _
    $region7: #{tpu_custom_call.1} parent=1 // pred_check_branch
      %28 = sbr.rel (0) target = $region9
    $region8: #{tpu_custom_call.1} parent=1 // pred_region
      %30 = vsyncadd [#allocation10], 0
      %s32 = sshll.u32 %s1, 4
      %s33 = int_to_ptr.hbm [resolvable:$true] %s32
      %s34 = sshll.u32 [#allocation9], 4
      %s35 = int_to_ptr.vmem [resolvable:$true] %s34
      %37 = dma.hbm_to_vmem [thread:$0]  %s33, 64, %s35, [#allocation10]
    $region9: #{tpu_custom_call.1} parent=1 // pred_fallthru
      _
    // Predicated region
    $region10: #{tpu_custom_call.1} parent=1 // pred_check
      _
    $region11: #{tpu_custom_call.1} parent=1 // pred_check_branch
      %39 = sbr.rel (0) target = $region13
    $region12: #{tpu_custom_call.1} parent=1 // pred_region
      %41 = vsyncadd [#allocation10], 0
      %s42 = sshll.u32 %s2, 4
      %s43 = int_to_ptr.hbm [resolvable:$true] %s42
      %s44 = sshll.u32 [#allocation11], 4
      %s45 = int_to_ptr.vmem [resolvable:$true] %s44
      %50 = dma.hbm_to_vmem [thread:$0]  %s43, 256, %s45, [#allocation10], 64, 64, 4
    $region13: #{tpu_custom_call.1} parent=1 // pred_fallthru
      _
    // Predicated region
    $region14: #{tpu_custom_call.1} parent=1 // pred_check
      _
    $region15: #{tpu_custom_call.1} parent=1 // pred_check_branch
      %52 = sbr.rel (0) target = $region17
    $region16: #{tpu_custom_call.1} parent=1 // pred_region
      %54 = vsyncadd [#allocation13], 0
      %s55 = sshll.u32 %s3, 4
      %s56 = int_to_ptr.hbm [resolvable:$true] %s55
      %s57 = sshll.u32 [#allocation12], 4
      %s58 = int_to_ptr.vmem [resolvable:$true] %s57
      %63 = dma.hbm_to_vmem [thread:$0]  %s56, 256, %s58, [#allocation13], 64, 64, 4
    $region17: #{tpu_custom_call.1} parent=1 // pred_fallthru
      _
    // Predicated region
    $region18: #{tpu_custom_call.1} parent=1 // pred_check
      _
    $region19: #{tpu_custom_call.1} parent=1 // pred_check_branch
      %65 = sbr.rel (0) target = $region21
    $region20: #{tpu_custom_call.1} parent=1 // pred_region
      _
    $region21: #{tpu_custom_call.1} parent=1 // pred_fallthru
      _
    // Predicated region
    $region22: #{tpu_custom_call.1} parent=1 // pred_check
      _
    $region23: #{tpu_custom_call.1} parent=1 // pred_check_branch
      %67 = sbr.rel (0) target = $region25
    $region24: #{tpu_custom_call.1} parent=1 // pred_region
      %69 = dma.done [#allocation7], 512
    $region25: #{tpu_custom_call.1} parent=1 // pred_fallthru
      _
    // Predicated region
    $region26: #{tpu_custom_call.1} parent=1 // pred_check
      _
    $region27: #{tpu_custom_call.1} parent=1 // pred_check_branch
      %71 = sbr.rel (0) target = $region29
    $region28: #{tpu_custom_call.1} parent=1 // pred_region
      %73 = dma.done [#allocation10], 64
    $region29: #{tpu_custom_call.1} parent=1 // pred_fallthru
      _
    // Predicated region
    $region30: #{tpu_custom_call.1} parent=1 // pred_check
      _
    $region31: #{tpu_custom_call.1} parent=1 // pred_check_branch
      %75 = sbr.rel (0) target = $region33
    $region32: #{tpu_custom_call.1} parent=1 // pred_region
      %77 = dma.done [#allocation10], 256
    $region33: #{tpu_custom_call.1} parent=1 // pred_fallthru
      _
    // Predicated region
    $region34: #{tpu_custom_call.1} parent=1 // pred_check
      _
    $region35: #{tpu_custom_call.1} parent=1 // pred_check_branch
      %79 = sbr.rel (0) target = $region37
    $region36: #{tpu_custom_call.1} parent=1 // pred_region
      %81 = dma.done [#allocation13], 256
    $region37: #{tpu_custom_call.1} parent=1 // pred_fallthru
      _
    %p83 = scmp.eq.s32.totalorder 0, 0
    // Predicated region
    $region38: #{tpu_custom_call.1} parent=1 // pred_check
      %p84 = pneg %p83
    $region39: #{tpu_custom_call.1} parent=1 // pred_check_branch
      %86 = sbr.rel (%p84) target = $region41
    $region40: #{tpu_custom_call.1} parent=1 // pred_region
      %v87 = vld [vmem:[#allocation9] sm:$0xf]
      %v88 = vld [vmem:[#allocation12] sm:$0xf]
      %v89 = vld [vmem:[#allocation12 + $0x4] sm:$0xf]
      %v90 = vld [vmem:[#allocation12 + $0x8] sm:$0xf]
      %v91 = vld [vmem:[#allocation12 + $0xc] sm:$0xf]
      %v96 = vunpack.c.l.b16 %v88
      %v97 = vunpack.c.l.b16 %v89
      %v98 = vunpack.c.l.b16 %v90
      %v99 = vunpack.c.l.b16 %v91
      %v100 = vpack.c.b16 %v97, %v96
      %v101 = vpack.c.b16 %v99, %v98
      %vm104 = vcmask 261120
      %v106 = vsel %vm104, %v87, 0
      %108 = vmatpush.bf16.msra.mxu0 0
      %109 = vmatpush.bf16.msra.mxu0 0
      %110 = vmatpush.bf16.msra.mxu0 0
      %111 = vmatpush.bf16.msra.mxu0 0
      %112 = vmatpush.bf16.msra.mxu0 0
      %113 = vmatpush.bf16.msra.mxu0 0
      %114 = vmatpush.bf16.msra.mxu0 %v101
      %115 = vmatpush.bf16.msra.mxu0 %v100
      %116 = vmatmul.bf16.gmra.mxu0 %v106
      %v117 = vpop.f32.mrf.mxu0
      %v118 = vadd.f32 0.0, %v117
      %v119 = vpop.f32.mrf.mxu0
      %120 = vdwg.mxu0
      %121 = vst.msk [vmem:[#allocation2] sm:$0xff] %vm104, %v118
      %vm122 = vcmask 7168
      %123 = vst.msk [vmem:[#allocation3] sm:$0xff] %vm122, -1e+30
      %124 = vst.msk [vmem:[#allocation4] sm:$0xff] %vm122, 0.0
      %125 = vst.msk [vmem:[#allocation5] sm:$0xff] %vm104, 0.0
    $region41: #{tpu_custom_call.1} parent=1 // pred_fallthru
      _
    %v126 = vld [vmem:[#allocation6] sm:$0xf]
    %v127 = vld [vmem:[#allocation6 + $0x4] sm:$0xf]
    %v128 = vld [vmem:[#allocation6 + $0x8] sm:$0xf]
    %v129 = vld [vmem:[#allocation6 + $0xc] sm:$0xf]
    %v130 = vld [vmem:[#allocation6 + $0x10] sm:$0xf]
    %v131 = vld [vmem:[#allocation6 + $0x14] sm:$0xf]
    %v132 = vld [vmem:[#allocation6 + $0x18] sm:$0xf]
    %v133 = vld [vmem:[#allocation6 + $0x1c] sm:$0xf]
    %v134 = vld [vmem:[#allocation11] sm:$0xf]
    %v135 = vld [vmem:[#allocation11 + $0x4] sm:$0xf]
    %v136 = vld [vmem:[#allocation11 + $0x8] sm:$0xf]
    %v137 = vld [vmem:[#allocation11 + $0xc] sm:$0xf]
    %v146 = vunpack.c.l.b16 %v126
    %v147 = vunpack.c.l.b16 %v127
    %v148 = vunpack.c.l.b16 %v128
    %v149 = vunpack.c.l.b16 %v129
    %v150 = vunpack.c.l.b16 %v130
    %v151 = vunpack.c.l.b16 %v131
    %v152 = vunpack.c.l.b16 %v132
    %v153 = vunpack.c.l.b16 %v133
    %v154 = vpack.c.b16 %v147, %v146
    %v155 = vpack.c.b16 %v149, %v148
    %v156 = vpack.c.b16 %v151, %v150
    %v157 = vpack.c.b16 %v153, %v152
    %v162 = vunpack.c.l.b16 %v134
    %v163 = vunpack.c.l.b16 %v135
    %v164 = vunpack.c.l.b16 %v136
    %v165 = vunpack.c.l.b16 %v137
    %v166 = vpack.c.b16 %v163, %v162
    %v167 = vpack.c.b16 %v165, %v164
    %vm170 = vcmask 261120
    %v172 = vsel %vm170, %v154, 0
    %v175 = vsel %vm170, %v155, 0
    %v178 = vsel %vm170, %v156, 0
    %v181 = vsel %vm170, %v157, 0
    %183 = vmatpush.bf16.msra.mxu0 0
    %184 = vmatpush.bf16.msra.mxu0 0
    %185 = vmatpush.bf16.msra.mxu0 0
    %186 = vmatpush.bf16.msra.mxu0 0
    %187 = vmatpush.bf16.msra.mxu0 0
    %188 = vmatpush.bf16.msra.mxu0 0
    %189 = vmatpush.bf16.msra.mxu0 %v167
    %190 = vmatpush.bf16.msra.mxu0 %v166
    %191 = vmatmul.bf16.gmra.mxu0 %v172
    %v192 = vpop.f32.mrf.mxu0
    %v193 = vadd.f32 0.0, %v192
    %v194 = vpop.f32.mrf.mxu0
    %v195 = vadd.f32 0.0, %v194
    %196 = vmatmul.bf16.gmra.mxu0 %v175
    %v197 = vpop.f32.mrf.mxu0
    %v198 = vadd.f32 0.0, %v197
    %v199 = vpop.f32.mrf.mxu0
    %v200 = vadd.f32 0.0, %v199
    %201 = vmatmul.bf16.gmra.mxu0 %v178
    %v202 = vpop.f32.mrf.mxu0
    %v203 = vadd.f32 0.0, %v202
    %v204 = vpop.f32.mrf.mxu0
    %v205 = vadd.f32 0.0, %v204
    %206 = vmatmul.bf16.gmra.mxu0 %v181
    %v207 = vpop.f32.mrf.mxu0
    %v208 = vadd.f32 0.0, %v207
    %v209 = vpop.f32.mrf.mxu0
    %v210 = vadd.f32 0.0, %v209
    %211 = vdwg.mxu0
    %v212 = vld [vmem:[#allocation2] sm:$0xff]
    %v214 = vrot.slane %v212, 1
    %v215 = vrot.slane %v212, 2
    %v216 = vrot.slane %v212, 3
    %v217 = vrot.slane %v212, 4
    %v218 = vrot.slane %v212, 5
    %v219 = vrot.slane %v212, 6
    %v220 = vrot.slane %v212, 7
    %v221 = vperm.slane %v212, 0
    %v222 = vperm.slane %v214, 0
    %v223 = vperm.slane %v215, 0
    %v224 = vperm.slane %v216, 0
    %v225 = vperm.slane %v217, 0
    %v226 = vperm.slane %v218, 0
    %v227 = vperm.slane %v219, 0
    %v228 = vperm.slane %v220, 0
    %v237 = vadd.f32 %v193, %v221
    %v238 = vadd.f32 %v195, %v222
    %v239 = vadd.f32 %v198, %v223
    %v240 = vadd.f32 %v200, %v224
    %v241 = vadd.f32 %v203, %v225
    %v242 = vadd.f32 %v205, %v226
    %v243 = vadd.f32 %v208, %v227
    %v244 = vadd.f32 %v210, %v228
    %v245 = vtanh.pop %v237
    %v246 = vtanh.pop %v238
    %v247 = vtanh.pop %v239
    %v248 = vtanh.pop %v240
    %v249 = vtanh.pop %v241
    %v250 = vtanh.pop %v242
    %v251 = vtanh.pop %v243
    %v252 = vtanh.pop %v244
    %v253 = vld [vmem:[%s4] sm:$0x1]
    %v254 = vunpack.c.l.bf16 %v253
    %v255 = vperm.slane %v254, 0
    %v256 = vmul.f32 %v245, %v255
    %v257 = vmul.f32 %v246, %v255
    %v258 = vmul.f32 %v247, %v255
    %v259 = vmul.f32 %v248, %v255
    %v260 = vmul.f32 %v249, %v255
    %v261 = vmul.f32 %v250, %v255
    %v262 = vmul.f32 %v251, %v255
    %v263 = vmul.f32 %v252, %v255
    %v264 = vsel %vm170, %v256, 0.0
    %265 = vadd.xlane.f32.xlu0 %v264
    %v266 = vpop.xlane.xlu0 %265
    %v267 = vsel %vm170, %v257, 0.0
    %268 = vadd.xlane.f32.xlu0 %v267
    %v269 = vpop.xlane.xlu0 %268
    %v270 = vsel %vm170, %v258, 0.0
    %271 = vadd.xlane.f32.xlu0 %v270
    %v272 = vpop.xlane.xlu0 %271
    %v273 = vsel %vm170, %v259, 0.0
    %274 = vadd.xlane.f32.xlu0 %v273
    %v275 = vpop.xlane.xlu0 %274
    %v276 = vsel %vm170, %v260, 0.0
    %277 = vadd.xlane.f32.xlu0 %v276
    %v278 = vpop.xlane.xlu0 %277
    %v279 = vsel %vm170, %v261, 0.0
    %280 = vadd.xlane.f32.xlu0 %v279
    %v281 = vpop.xlane.xlu0 %280
    %v282 = vsel %vm170, %v262, 0.0
    %283 = vadd.xlane.f32.xlu0 %v282
    %v284 = vpop.xlane.xlu0 %283
    %v285 = vsel %vm170, %v263, 0.0
    %286 = vadd.xlane.f32.xlu0 %v285
    %v287 = vpop.xlane.xlu0 %286
    %v288 = vld [vmem:[#allocation3] sm:$0xff]
    %v297 = vlaneseq
    %v298 = vand.u32 %v297, 127
    %v299 = vperm.slane %v266, %v298
    %v300 = vperm.slane %v269, %v298
    %v301 = vperm.slane %v272, %v298
    %v302 = vperm.slane %v275, %v298
    %v303 = vperm.slane %v278, %v298
    %v304 = vperm.slane %v281, %v298
    %v305 = vperm.slane %v284, %v298
    %v306 = vperm.slane %v287, %v298
    %vm307 = vcmask 1041409
    %v308 = vsel %vm307, %v300, %v299
    %vm309 = vcmask 1042434
    %v310 = vsel %vm309, %v301, %v308
    %vm311 = vcmask 1043459
    %v312 = vsel %vm311, %v302, %v310
    %vm313 = vcmask 1044484
    %v314 = vsel %vm313, %v303, %v312
    %vm315 = vcmask 1045509
    %v316 = vsel %vm315, %v304, %v314
    %vm317 = vcmask 1046534
    %v318 = vsel %vm317, %v305, %v316
    %vm319 = vcmask 1047559
    %v320 = vsel %vm319, %v306, %v318
    %vm322 = vcmask 64512
    %v323 = vsel %vm322, %v320, -inf
    %324 = vmax.xlane.f32.xlu0 %v323
    %v325 = vpop.xlane.xlu0 %324
    %v326 = vmax.f32 %v288, %v325
    %v327 = vsub.f32 %v288, %v326
    %v328 = vmul.f32 %v327, 1.442695
    %v329 = vpow.pop %v328
    %331 = vset.pattern.permute.xlu0 0
    %332 = vperm.xlu0 %331, %v326
    %v333 = vpop.permute.xlu0 %332
    %v334 = vperm.slane %v333, 0
    %v335 = vperm.slane %v333, 1
    %v336 = vperm.slane %v333, 2
    %v337 = vperm.slane %v333, 3
    %v338 = vperm.slane %v333, 4
    %v339 = vperm.slane %v333, 5
    %v340 = vperm.slane %v333, 6
    %v341 = vperm.slane %v333, 7
    %v350 = vsub.f32 %v266, %v334
    %v351 = vsub.f32 %v269, %v335
    %v352 = vsub.f32 %v272, %v336
    %v353 = vsub.f32 %v275, %v337
    %v354 = vsub.f32 %v278, %v338
    %v355 = vsub.f32 %v281, %v339
    %v356 = vsub.f32 %v284, %v340
    %v357 = vsub.f32 %v287, %v341
    %v358 = vmul.f32 %v350, 1.442695
    %v359 = vpow.pop %v358
    %v360 = vmul.f32 %v351, 1.442695
    %v361 = vpow.pop %v360
    %v362 = vmul.f32 %v352, 1.442695
    %v363 = vpow.pop %v362
    %v364 = vmul.f32 %v353, 1.442695
    %v365 = vpow.pop %v364
    %v366 = vmul.f32 %v354, 1.442695
    %v367 = vpow.pop %v366
    %v368 = vmul.f32 %v355, 1.442695
    %v369 = vpow.pop %v368
    %v370 = vmul.f32 %v356, 1.442695
    %v371 = vpow.pop %v370
    %v372 = vmul.f32 %v357, 1.442695
    %v373 = vpow.pop %v372
    %v374 = vunpack.c.l.bf16 %v126
    %v375 = vunpack.c.l.bf16 %v127
    %v376 = vunpack.c.l.bf16 %v128
    %v377 = vunpack.c.l.bf16 %v129
    %v378 = vunpack.c.l.bf16 %v130
    %v379 = vunpack.c.l.bf16 %v131
    %v380 = vunpack.c.l.bf16 %v132
    %v381 = vunpack.c.l.bf16 %v133
    %383 = vset.pattern.permute.xlu0 0
    %384 = vperm.xlu0 %383, %v359
    %v385 = vpop.permute.xlu0 %384
    %388 = vset.pattern.permute.xlu0 0
    %389 = vperm.xlu0 %388, %v361
    %v390 = vpop.permute.xlu0 %389
    %393 = vset.pattern.permute.xlu0 0
    %394 = vperm.xlu0 %393, %v363
    %v395 = vpop.permute.xlu0 %394
    %398 = vset.pattern.permute.xlu0 0
    %399 = vperm.xlu0 %398, %v365
    %v400 = vpop.permute.xlu0 %399
    %403 = vset.pattern.permute.xlu0 0
    %404 = vperm.xlu0 %403, %v367
    %v405 = vpop.permute.xlu0 %404
    %408 = vset.pattern.permute.xlu0 0
    %409 = vperm.xlu0 %408, %v369
    %v410 = vpop.permute.xlu0 %409
    %413 = vset.pattern.permute.xlu0 0
    %414 = vperm.xlu0 %413, %v371
    %v415 = vpop.permute.xlu0 %414
    %418 = vset.pattern.permute.xlu0 0
    %419 = vperm.xlu0 %418, %v373
    %v420 = vpop.permute.xlu0 %419
    %v422 = vmul.f32 %v385, %v374
    %v423 = vmul.f32 %v390, %v375
    %v424 = vmul.f32 %v395, %v376
    %v425 = vmul.f32 %v400, %v377
    %v426 = vmul.f32 %v405, %v378
    %v427 = vmul.f32 %v410, %v379
    %v428 = vmul.f32 %v415, %v380
    %v429 = vmul.f32 %v420, %v381
    %v430 = vld [vmem:[#allocation4] sm:$0xff]
    %v431 = vmul.f32 %v329, %v430
    %v432 = vperm.slane %v385, %v298
    %v433 = vperm.slane %v390, %v298
    %v434 = vperm.slane %v395, %v298
    %v435 = vperm.slane %v400, %v298
    %v436 = vperm.slane %v405, %v298
    %v437 = vperm.slane %v410, %v298
    %v438 = vperm.slane %v415, %v298
    %v439 = vperm.slane %v420, %v298
    %v440 = vsel %vm307, %v433, %v432
    %v441 = vsel %vm309, %v434, %v440
    %v442 = vsel %vm311, %v435, %v441
    %v443 = vsel %vm313, %v436, %v442
    %v444 = vsel %vm315, %v437, %v443
    %v445 = vsel %vm317, %v438, %v444
    %v446 = vsel %vm319, %v439, %v445
    %v448 = vsel %vm322, %v446, 0.0
    %449 = vadd.xlane.f32.xlu0 %v448
    %v450 = vpop.xlane.xlu0 %449
    %v451 = vadd.f32 %v431, %v450
    %vm452 = vcmask 7168
    %453 = vst.msk [vmem:[#allocation4] sm:$0xff] %vm452, %v451
    %v454 = vld [vmem:[#allocation5] sm:$0xff]
    %456 = vset.pattern.permute.xlu0 0
    %457 = vperm.xlu0 %456, %v329
    %v458 = vpop.permute.xlu0 %457
    %v460 = vmul.f32 %v458, %v454
    %v461 = vsel %vm170, %v422, 0.0
    %v462 = vrot.slane %v461, 4
    %v463 = vadd.f32 %v461, %v462
    %v464 = vrot.slane %v463, 2
    %v465 = vadd.f32 %v463, %v464
    %v466 = vrot.slane %v465, 1
    %v467 = vadd.f32 %v465, %v466
    %v468 = vsel %vm170, %v423, 0.0
    %v469 = vrot.slane %v468, 4
    %v470 = vadd.f32 %v468, %v469
    %v471 = vrot.slane %v470, 2
    %v472 = vadd.f32 %v470, %v471
    %v473 = vrot.slane %v472, 1
    %v474 = vadd.f32 %v472, %v473
    %v475 = vsel %vm170, %v424, 0.0
    %v476 = vrot.slane %v475, 4
    %v477 = vadd.f32 %v475, %v476
    %v478 = vrot.slane %v477, 2
    %v479 = vadd.f32 %v477, %v478
    %v480 = vrot.slane %v479, 1
    %v481 = vadd.f32 %v479, %v480
    %v482 = vsel %vm170, %v425, 0.0
    %v483 = vrot.slane %v482, 4
    %v484 = vadd.f32 %v482, %v483
    %v485 = vrot.slane %v484, 2
    %v486 = vadd.f32 %v484, %v485
    %v487 = vrot.slane %v486, 1
    %v488 = vadd.f32 %v486, %v487
    %v489 = vsel %vm170, %v426, 0.0
    %v490 = vrot.slane %v489, 4
    %v491 = vadd.f32 %v489, %v490
    %v492 = vrot.slane %v491, 2
    %v493 = vadd.f32 %v491, %v492
    %v494 = vrot.slane %v493, 1
    %v495 = vadd.f32 %v493, %v494
    %v496 = vsel %vm170, %v427, 0.0
    %v497 = vrot.slane %v496, 4
    %v498 = vadd.f32 %v496, %v497
    %v499 = vrot.slane %v498, 2
    %v500 = vadd.f32 %v498, %v499
    %v501 = vrot.slane %v500, 1
    %v502 = vadd.f32 %v500, %v501
    %v503 = vsel %vm170, %v428, 0.0
    %v504 = vrot.slane %v503, 4
    %v505 = vadd.f32 %v503, %v504
    %v506 = vrot.slane %v505, 2
    %v507 = vadd.f32 %v505, %v506
    %v508 = vrot.slane %v507, 1
    %v509 = vadd.f32 %v507, %v508
    %v510 = vsel %vm170, %v429, 0.0
    %v511 = vrot.slane %v510, 4
    %v512 = vadd.f32 %v510, %v511
    %v513 = vrot.slane %v512, 2
    %v514 = vadd.f32 %v512, %v513
    %v515 = vrot.slane %v514, 1
    %v516 = vadd.f32 %v514, %v515
    %v525 = vsel %vm307, %v474, %v467
    %v526 = vsel %vm309, %v481, %v525
    %v527 = vsel %vm311, %v488, %v526
    %v528 = vsel %vm313, %v495, %v527
    %v529 = vsel %vm315, %v502, %v528
    %v530 = vsel %vm317, %v509, %v529
    %v531 = vsel %vm319, %v516, %v530
    %v533 = vadd.f32 %v460, %v531
    %534 = vst.msk [vmem:[#allocation5] sm:$0xff] %vm170, %v533
    %535 = vst.msk [vmem:[#allocation3] sm:$0xff] %vm452, %v326
    // Predicated region
    $region42: #{tpu_custom_call.1} parent=1 // pred_check
      %p536 = pneg %p83
    $region43: #{tpu_custom_call.1} parent=1 // pred_check_branch
      %538 = sbr.rel (%p536) target = $region45
    $region44: #{tpu_custom_call.1} parent=1 // pred_region
      %v539 = vld [vmem:[#allocation4] sm:$0xff]
      %v540 = vrcp.pop %v539
      %v541 = vld [vmem:[#allocation5] sm:$0xff]
      %543 = vset.pattern.permute.xlu0 0
      %544 = vperm.xlu0 %543, %v540
      %v545 = vpop.permute.xlu0 %544
      %v547 = vmul.f32 %v541, %v545
      %548 = vst.msk [vmem:[#allocation14] sm:$0xff] %vm170, %v547
    $region45: #{tpu_custom_call.1} parent=1 // pred_fallthru
      _
    // Predicated region
    $region46: #{tpu_custom_call.1} parent=1 // pred_check
      _
    $region47: #{tpu_custom_call.1} parent=1 // pred_check_branch
      %550 = sbr.rel (0) target = $region49
    $region48: #{tpu_custom_call.1} parent=1 // pred_region
      %552 = vsyncadd [#allocation8], 0
      %s554 = sshll.u32 [#allocation14], 4
      %s555 = int_to_ptr.vmem [resolvable:$true] %s554
      %s556 = sshll.u32 %s5, 4
      %s557 = int_to_ptr.hbm [resolvable:$true] %s556
      %559 = dma.vmem_to_hbm [thread:$0]  %s555, 128, %s557, [#allocation8]
    $region49: #{tpu_custom_call.1} parent=1 // pred_fallthru
      _
    // Predicated region
    $region50: #{tpu_custom_call.1} parent=1 // pred_check
      _
    $region51: #{tpu_custom_call.1} parent=1 // pred_check_branch
      %561 = sbr.rel (0) target = $region53
    $region52: #{tpu_custom_call.1} parent=1 // pred_region
      %563 = dma.done [#allocation8], 128
    $region53: #{tpu_custom_call.1} parent=1 // pred_fallthru
      _
    %564 = vsyncpa [#allocation7], 1
    %565 = vsyncpa [#allocation10], 1
    %566 = vsyncpa [#allocation13], 1
    %567 = vsyncpa [#allocation8], 1

</llo_original>
